<compile_context>
chip_gen: v5e
topology: v5e:2x2
jax: 0.10.0
libtpu: 0.0.40
codegen_flags: <defaults>
</compile_context>

<pallas_src>
import jax
import jax.numpy as jnp
from jax.experimental import pallas as pl
from jax.experimental.pallas import tpu as pltpu


def _round_up(n, m):
    return (n + m - 1) // m * m


def _pick_tile(dim, candidates):
    """Largest candidate that evenly divides `dim`, else the full dim."""
    for c in candidates:
        if c <= dim and dim % c == 0:
            return c
    return dim


# ----------------------------- kernels --------------------------------------

def _linear_single_kernel(x_ref, w_ref, b_ref, o_ref):
    # Whole problem in one block: x (B, V) f32, w (V, Cp) bf16, b (1, Cp) f32.
    x = x_ref[...].astype(jnp.bfloat16)          # in-kernel cast (VPU)
    acc = jnp.dot(x, w_ref[...], preferred_element_type=jnp.float32)
    o_ref[...] = acc + b_ref[...]


def _linear_tiled_kernel(x_ref, w_ref, b_ref, o_ref, acc_ref):
    # x_ref: (tm, tk) f32   w_ref: (tk, tn) bf16
    # b_ref: (1, tn) f32    o_ref: (tm, tn) f32   acc_ref: (tm, tn) f32
    k = pl.program_id(2)

    @pl.when(k == 0)
    def _():
        # Fold the bias into the accumulator init (no separate epilogue add).
        acc_ref[...] = jnp.broadcast_to(b_ref[...], acc_ref.shape)

    acc_ref[...] += jnp.dot(x_ref[...].astype(jnp.bfloat16), w_ref[...],
                            preferred_element_type=jnp.float32)

    @pl.when(k == pl.num_programs(2) - 1)
    def _():
        o_ref[...] = acc_ref[...].astype(o_ref.dtype)


# ------------------------- param preparation --------------------------------

def prepare_params(weight_cv, bias_c):
    """One-time conversion of torch-layout params to kernel layout.

    weight_cv: [C, V] (torch nn.Linear layout), bias_c: [C].
    Returns (w_vc bf16 [V, Cp], bias f32 [1, Cp], C) with Cp a multiple of
    128 (lane-dense output, unmasked vst).  The bf16 cast is done ONCE here
    so the forward never re-reads / re-writes the f32 weight.
    """
    C, V = weight_cv.shape
    Cp = _round_up(C, 128)
    w_vc = jnp.zeros((V, Cp), jnp.bfloat16).at[:, :C].set(
        weight_cv.T.astype(jnp.bfloat16))
    b = jnp.zeros((1, Cp), jnp.float32).at[0, :C].set(bias_c.astype(jnp.float32))
    return w_vc, b, C


# ------------------------------ forward --------------------------------------

_VMEM_LIMIT_BYTES = 48 * 1024 * 1024    # explicit scoped-VMEM limit (safe on v7x's 64 MiB)
_PIPE_BUDGET_BYTES = 24 * 1024 * 1024   # <= 50% of the limit for pipelined buffers
_SINGLE_BLOCK_BYTES = 6 * 1024 * 1024   # tiny-problem fast path threshold


def softmax_regression_forward(x, w_vc, b_1c, num_classes):
    """x: [B, V] f32, w_vc: [V, Cp] bf16 (pre-transposed), b_1c: [1, Cp] f32.

    Returns [1, B, num_classes], matching torch.unsqueeze(self.layer(x), 0).
    """
    B, V = x.shape
    Cp = w_vc.shape[1]

    total_bytes = B * V * 4 + V * Cp * 2 + Cp * 4 + B * Cp * 4
    if total_bytes <= _SINGLE_BLOCK_BYTES:
        # ---- single-block fast path: no grid, no scratch, no pl.when ----
        out = pl.pallas_call(
            _linear_single_kernel,
            out_shape=jax.ShapeDtypeStruct((B, Cp), jnp.float32),
            compiler_params=pltpu.CompilerParams(
                vmem_limit_bytes=_VMEM_LIMIT_BYTES),
        )(x, w_vc, b_1c)
        return out[None, :, :num_classes]

    # ---- general tiled path: grid = (B/tm, Cp/tn, V/tk) --------------------
    tm = _pick_tile(B, (512, 256, 128, 64, 32, 16, 8))
    tn = _pick_tile(Cp, (2048, 1024, 512, 256, 128))

    # VMEM budget: acc (tm,tn) f32 + out dbl-buf (tm,tn) f32 + bias dbl-buf,
    # plus per-tk: W dbl-buf (tk,tn) bf16 + x dbl-buf (tm,tk) f32.
    fixed = tm * tn * 4 + 2 * tm * tn * 4 + 2 * tn * 4
    per_tk = 2 * tn * 2 + 2 * tm * 4
    tk_max = max(128, (_PIPE_BUDGET_BYTES - fixed) // per_tk)
    tk_cands = tuple(c for c in (V, 16384, 8192, 4096, 2048, 1024, 512, 256, 128)
                     if c <= tk_max)
    tk = _pick_tile(V, tk_cands) if tk_cands else V

    grid = (B // tm, Cp // tn, V // tk)

    out = pl.pallas_call(
        _linear_tiled_kernel,
        out_shape=jax.ShapeDtypeStruct((B, Cp), jnp.float32),
        grid_spec=pltpu.PrefetchScalarGridSpec(
            num_scalar_prefetch=0,
            grid=grid,
            in_specs=[
                pl.BlockSpec((tm, tk), lambda i, j, k: (i, k)),   # x tile (f32)
                pl.BlockSpec((tk, tn), lambda i, j, k: (k, j)),   # W tile (bf16)
                pl.BlockSpec((1, tn), lambda i, j, k: (0, j)),    # bias tile
            ],
            out_specs=pl.BlockSpec((tm, tn), lambda i, j, k: (i, j)),
            scratch_shapes=[pltpu.VMEM((tm, tn), jnp.float32)],
        ),
        compiler_params=pltpu.CompilerParams(
            dimension_semantics=("parallel", "parallel", "arbitrary"),
            vmem_limit_bytes=_VMEM_LIMIT_BYTES),
    )(x, w_vc, b_1c)

    # unsqueeze(0) + drop class padding (no-op when C is already x128).
    return out[None, :, :num_classes]


# TODO(synk): optional v7x-only fp8 weight path (per-channel scales folded
# into the bias/accumulator) for a further ~2x on the weight-BW roofline.


# ------------------------------ self-test ------------------------------------

def _run_case(key, batch, vocab_size, classes, atol, rtol):
    kx, kw, kb = jax.random.split(key, 3)
    x = jax.random.normal(kx, (batch, vocab_size), dtype=jnp.float32)
    bound = 1.0 / (vocab_size ** 0.5)
    weight = jax.random.uniform(kw, (classes, vocab_size), jnp.float32,
                                minval=-bound, maxval=bound)
    bias = jax.random.uniform(kb, (classes,), jnp.float32,
                              minval=-bound, maxval=bound)

    # One-time param conversion (outside the forward path).
    w_vc, b_1c, n_classes = prepare_params(weight, bias)

    fwd = jax.jit(softmax_regression_forward, static_argnums=(3,))
    out = fwd(x, w_vc, b_1c, n_classes)
    jax.block_until_ready(out)

    # Reference 1: same bf16-rounded inputs, f32 accumulation (tight-ish).
    x_r = x.astype(jnp.bfloat16).astype(jnp.float32)
    w_r = weight.T.astype(jnp.bfloat16).astype(jnp.float32)
    ref_bf = (jnp.dot(x_r, w_r, precision=jax.lax.Precision.HIGHEST)
              + bias)[None, ...]
    # Reference 2: pure f32 (loose check, bf16 cast tolerance).
    ref_f32 = (x @ weight.T + bias)[None, ...]

    assert out.shape == (1, batch, classes), out.shape
    assert jnp.allclose(out, ref_bf, atol=atol, rtol=rtol), \
        f"mismatch vs bf16-rounded reference (B={batch}, V={vocab_size}, C={classes})"
    assert jnp.allclose(out, ref_f32, atol=5e-2, rtol=5e-2), \
        f"mismatch vs f32 reference (B={batch}, V={vocab_size}, C={classes})"


if __name__ == "__main__":
    key = jax.random.PRNGKey(0)
    k1, k2 = jax.random.split(key)

    # Small config consistent with the module (exercises the single-block path).
    _run_case(k1, batch=8, vocab_size=256, classes=128, atol=1e-4, rtol=1e-4)

    # Larger config to exercise the tiled / accumulator path (multi-k grid).
    _run_case(k2, batch=16, vocab_size=32768, classes=512, atol=2e-3, rtol=2e-3)

    print("KERNEL_OK")
</pallas_src>

<mosaic_0001>
module attributes {stable_mosaic.version = 11 : i64} {
  func.func @_linear_single_kernel(%arg0: memref<8x256xf32, #tpu.memory_space<vmem>>, %arg1: memref<256x128xbf16, #tpu.memory_space<vmem>>, %arg2: memref<1x128xf32, #tpu.memory_space<vmem>>, %arg3: memref<8x128xf32, #tpu.memory_space<vmem>>) attributes {dimension_semantics = [], scalar_prefetch = 0 : i64, scratch_operands = 0 : i64, tpu.core_type = #tpu.core_type<tc>} {
    %c0 = arith.constant 0 : index
    %c0_0 = arith.constant 0 : index
    %0 = vector.load %arg0[%c0, %c0_0] : memref<8x256xf32, #tpu.memory_space<vmem>>, vector<8x256xf32>
    %1 = arith.truncf %0 : vector<8x256xf32> to vector<8x256xbf16>
    %c0_1 = arith.constant 0 : index
    %c0_2 = arith.constant 0 : index
    %2 = vector.load %arg1[%c0_1, %c0_2] : memref<256x128xbf16, #tpu.memory_space<vmem>>, vector<256x128xbf16>
    %cst = arith.constant dense<0.000000e+00> : vector<8x128xf32>
    %3 = tpu.matmul %1, %2, %cst {dimension_numbers = #tpu.dot_dimension_numbers<[1], [0], [0], [1], [0, 0, 1, 1], [], []>} : vector<8x256xbf16>, vector<256x128xbf16>, vector<8x128xf32> -> vector<8x128xf32>
    %c0_3 = arith.constant 0 : index
    %c0_4 = arith.constant 0 : index
    %4 = vector.load %arg2[%c0_3, %c0_4] : memref<1x128xf32, #tpu.memory_space<vmem>>, vector<1x128xf32>
    %5 = vector.broadcast %4 : vector<1x128xf32> to vector<8x128xf32>
    %6 = arith.addf %3, %5 : vector<8x128xf32>
    %c0_5 = arith.constant 0 : index
    %c0_6 = arith.constant 0 : index
    %7 = vector.load %arg3[%c0_5, %c0_6] : memref<8x128xf32, #tpu.memory_space<vmem>>, vector<8x128xf32>
    tpu.vector_store %arg3[%c0_5, %c0_6], %6 {strides = array<i32>} : memref<8x128xf32, #tpu.memory_space<vmem>>, vector<8x128xf32>,
    return
  }
}

</mosaic_0001>

<llo_original>
// kernel: softmax_regression_forward.1
$region0: #{softmax_regression_forward.1}
  #allocation0 [shape = 'u32[]', space=smem, size = 0x4, offset = 0x4, fixed_abs, tag = 'smem constant byte address 0x4 - core index']
  #allocation1 [shape = 'u32[72,128]{1,0:T(1,128)}', space=vmem, size = 0x9000, scoped, tag = 'internal scratch']
  %s0 = inlined_call_operand.hbm [shape: f32[8,256], index: 0, kind: input, shape index: {}]
  %s1 = inlined_call_operand.hbm [shape: bf16[256,128], index: 1, kind: input, shape index: {}]
  %s2 = inlined_call_operand.vmem [shape: f32[1,128], index: 2, kind: input, shape index: {}]
  %s3 = inlined_call_operand.hbm [shape: f32[8,128], index: 3, kind: output, shape index: {}]
  %s4 = sld [smem:[#allocation0]]
  $region30: #{softmax_regression_forward.1} parent=0
    _
  %s6 = ssub.s32 1, %s4
  %s7 = scalar_select 0, %s6, %s4
  $region1: #{softmax_regression_forward.1} parent=0
    #allocation2 [shape = 'u8[8192]{0}', space=vmem, size = 0x2000, scoped, tag = 'input window, operand 0, single buffered']
    #allocation3 [shape = 's32[1]{0}', space=sflag, size = 0x4, scoped, tag = 'scoped memory for softmax_regression_forward.1']
    #allocation4 [shape = 's32[1]{0}', space=sflag, size = 0x4, scoped, tag = 'scoped memory for softmax_regression_forward.1']
    #allocation5 [shape = 'u8[65536]{0}', space=vmem, size = 0x10000, scoped, tag = 'input window, operand 1, single buffered']
    #allocation6 [shape = 's32[1]{0}', space=sflag, size = 0x4, scoped, tag = 'scoped memory for softmax_regression_forward.1']
    #allocation7 [shape = 'u8[4096]{0}', space=vmem, size = 0x1000, scoped, tag = 'output window, operand 0, single buffered']
    %8 = vsyncpa [#allocation3], 0
    %9 = vsyncpa [#allocation6], 0
    %10 = vsyncpa [#allocation4], 0
    // Predicated region
    $region2: #{softmax_regression_forward.1} parent=1 // pred_check
      _
    $region3: #{softmax_regression_forward.1} parent=1 // pred_check_branch
      %12 = sbr.rel (0) target = $region5
    $region4: #{softmax_regression_forward.1} parent=1 // pred_region
      %14 = vsyncadd [#allocation3], 0
      %s16 = sshll.u32 %s0, 4
      %s17 = int_to_ptr.hbm [resolvable:$true] %s16
      %s18 = sshll.u32 [#allocation2], 4
      %s19 = int_to_ptr.vmem [resolvable:$true] %s18
      %21 = dma.hbm_to_vmem [thread:$0]  %s17, 256, %s19, [#allocation3]
    $region5: #{softmax_regression_forward.1} parent=1 // pred_fallthru
      _
    // Predicated region
    $region6: #{softmax_regression_forward.1} parent=1 // pred_check
      _
    $region7: #{softmax_regression_forward.1} parent=1 // pred_check_branch
      %23 = sbr.rel (0) target = $region9
    $region8: #{softmax_regression_forward.1} parent=1 // pred_region
      %25 = vsyncadd [#allocation6], 0
      %s26 = sshll.u32 %s1, 4
      %s27 = int_to_ptr.hbm [resolvable:$true] %s26
      %s28 = sshll.u32 [#allocation5], 4
      %s29 = int_to_ptr.vmem [resolvable:$true] %s28
      %34 = dma.hbm_to_vmem [thread:$0]  %s27, 2048, %s29, [#allocation6], 64, 64, 4
    $region9: #{softmax_regression_forward.1} parent=1 // pred_fallthru
      _
    // Predicated region
    $region10: #{softmax_regression_forward.1} parent=1 // pred_check
      _
    $region11: #{softmax_regression_forward.1} parent=1 // pred_check_branch
      %36 = sbr.rel (0) target = $region13
    $region12: #{softmax_regression_forward.1} parent=1 // pred_region
      _
    $region13: #{softmax_regression_forward.1} parent=1 // pred_fallthru
      _
    // Predicated region
    $region14: #{softmax_regression_forward.1} parent=1 // pred_check
      _
    $region15: #{softmax_regression_forward.1} parent=1 // pred_check_branch
      %38 = sbr.rel (0) target = $region17
    $region16: #{softmax_regression_forward.1} parent=1 // pred_region
      %40 = dma.done [#allocation3], 256
    $region17: #{softmax_regression_forward.1} parent=1 // pred_fallthru
      _
    // Predicated region
    $region18: #{softmax_regression_forward.1} parent=1 // pred_check
      _
    $region19: #{softmax_regression_forward.1} parent=1 // pred_check_branch
      %42 = sbr.rel (0) target = $region21
    $region20: #{softmax_regression_forward.1} parent=1 // pred_region
      %44 = dma.done [#allocation6], 2048
    $region21: #{softmax_regression_forward.1} parent=1 // pred_fallthru
      _
    %v45 = vld [vmem:[#allocation2] sm:$0xff]
    %v46 = vld [vmem:[#allocation2 + $0x8] sm:$0xff]
    %v47 = vpack.c.bf16 %v45, %v45
    %v48 = vpack.c.bf16 %v46, %v46
    %v49 = vld [vmem:[#allocation5] sm:$0xf]
    %v50 = vld [vmem:[#allocation5 + $0x4] sm:$0xf]
    %v51 = vld [vmem:[#allocation5 + $0x8] sm:$0xf]
    %v52 = vld [vmem:[#allocation5 + $0xc] sm:$0xf]
    %v53 = vld [vmem:[#allocation5 + $0x10] sm:$0xf]
    %v54 = vld [vmem:[#allocation5 + $0x14] sm:$0xf]
    %v55 = vld [vmem:[#allocation5 + $0x18] sm:$0xf]
    %v56 = vld [vmem:[#allocation5 + $0x1c] sm:$0xf]
    %v57 = vld [vmem:[#allocation5 + $0x20] sm:$0xf]
    %v58 = vld [vmem:[#allocation5 + $0x24] sm:$0xf]
    %v59 = vld [vmem:[#allocation5 + $0x28] sm:$0xf]
    %v60 = vld [vmem:[#allocation5 + $0x2c] sm:$0xf]
    %v61 = vld [vmem:[#allocation5 + $0x30] sm:$0xf]
    %v62 = vld [vmem:[#allocation5 + $0x34] sm:$0xf]
    %v63 = vld [vmem:[#allocation5 + $0x38] sm:$0xf]
    %v64 = vld [vmem:[#allocation5 + $0x3c] sm:$0xf]
    %v65 = vld [vmem:[#allocation5 + $0x40] sm:$0xf]
    %v66 = vld [vmem:[#allocation5 + $0x44] sm:$0xf]
    %v67 = vld [vmem:[#allocation5 + $0x48] sm:$0xf]
    %v68 = vld [vmem:[#allocation5 + $0x4c] sm:$0xf]
    %v69 = vld [vmem:[#allocation5 + $0x50] sm:$0xf]
    %v70 = vld [vmem:[#allocation5 + $0x54] sm:$0xf]
    %v71 = vld [vmem:[#allocation5 + $0x58] sm:$0xf]
    %v72 = vld [vmem:[#allocation5 + $0x5c] sm:$0xf]
    %v73 = vld [vmem:[#allocation5 + $0x60] sm:$0xf]
    %v74 = vld [vmem:[#allocation5 + $0x64] sm:$0xf]
    %v75 = vld [vmem:[#allocation5 + $0x68] sm:$0xf]
    %v76 = vld [vmem:[#allocation5 + $0x6c] sm:$0xf]
    %v77 = vld [vmem:[#allocation5 + $0x70] sm:$0xf]
    %v78 = vld [vmem:[#allocation5 + $0x74] sm:$0xf]
    %v79 = vld [vmem:[#allocation5 + $0x78] sm:$0xf]
    %v80 = vld [vmem:[#allocation5 + $0x7c] sm:$0xf]
    %v81 = vld [vmem:[%s2] sm:$0x1]
    %v83 = vperm.slane %v81, 0
    %v117 = vunpack.c.l.b16 %v49
    %v118 = vunpack.c.l.b16 %v50
    %v119 = vunpack.c.l.b16 %v51
    %v120 = vunpack.c.l.b16 %v52
    %v121 = vunpack.c.l.b16 %v53
    %v122 = vunpack.c.l.b16 %v54
    %v123 = vunpack.c.l.b16 %v55
    %v124 = vunpack.c.l.b16 %v56
    %v125 = vunpack.c.l.b16 %v57
    %v126 = vunpack.c.l.b16 %v58
    %v127 = vunpack.c.l.b16 %v59
    %v128 = vunpack.c.l.b16 %v60
    %v129 = vunpack.c.l.b16 %v61
    %v130 = vunpack.c.l.b16 %v62
    %v131 = vunpack.c.l.b16 %v63
    %v132 = vunpack.c.l.b16 %v64
    %v133 = vunpack.c.l.b16 %v65
    %v134 = vunpack.c.l.b16 %v66
    %v135 = vunpack.c.l.b16 %v67
    %v136 = vunpack.c.l.b16 %v68
    %v137 = vunpack.c.l.b16 %v69
    %v138 = vunpack.c.l.b16 %v70
    %v139 = vunpack.c.l.b16 %v71
    %v140 = vunpack.c.l.b16 %v72
    %v141 = vunpack.c.l.b16 %v73
    %v142 = vunpack.c.l.b16 %v74
    %v143 = vunpack.c.l.b16 %v75
    %v144 = vunpack.c.l.b16 %v76
    %v145 = vunpack.c.l.b16 %v77
    %v146 = vunpack.c.l.b16 %v78
    %v147 = vunpack.c.l.b16 %v79
    %v148 = vunpack.c.l.b16 %v80
    %v149 = vpack.c.b16 %v118, %v117
    %v150 = vpack.c.b16 %v120, %v119
    %v151 = vpack.c.b16 %v122, %v121
    %v152 = vpack.c.b16 %v124, %v123
    %v153 = vpack.c.b16 %v126, %v125
    %v154 = vpack.c.b16 %v128, %v127
    %v155 = vpack.c.b16 %v130, %v129
    %v156 = vpack.c.b16 %v132, %v131
    %v157 = vpack.c.b16 %v134, %v133
    %v158 = vpack.c.b16 %v136, %v135
    %v159 = vpack.c.b16 %v138, %v137
    %v160 = vpack.c.b16 %v140, %v139
    %v161 = vpack.c.b16 %v142, %v141
    %v162 = vpack.c.b16 %v144, %v143
    %v163 = vpack.c.b16 %v146, %v145
    %v164 = vpack.c.b16 %v148, %v147
    %181 = vmatpush.bf16.msra.mxu0 %v156
    %182 = vmatpush.bf16.msra.mxu0 %v155
    %183 = vmatpush.bf16.msra.mxu0 %v154
    %184 = vmatpush.bf16.msra.mxu0 %v153
    %185 = vmatpush.bf16.msra.mxu0 %v152
    %186 = vmatpush.bf16.msra.mxu0 %v151
    %187 = vmatpush.bf16.msra.mxu0 %v150
    %188 = vmatpush.bf16.msra.mxu0 %v149
    %189 = vmatmul.bf16.gmra.mxu0 %v47
    %v190 = vpop.f32.mrf.mxu0
    %v191 = vadd.f32 %v83, %v190
    %v192 = vpop.f32.mrf.mxu0
    %193 = vdwg.mxu0
    %194 = vmatpush.bf16.msra.mxu0 %v164
    %195 = vmatpush.bf16.msra.mxu0 %v163
    %196 = vmatpush.bf16.msra.mxu0 %v162
    %197 = vmatpush.bf16.msra.mxu0 %v161
    %198 = vmatpush.bf16.msra.mxu0 %v160
    %199 = vmatpush.bf16.msra.mxu0 %v159
    %200 = vmatpush.bf16.msra.mxu0 %v158
    %201 = vmatpush.bf16.msra.mxu0 %v157
    %202 = vmatmul.bf16.gmra.mxu0 %v48
    %v203 = vpop.f32.mrf.mxu0
    %v204 = vadd.f32 %v191, %v203
    %v205 = vpop.f32.mrf.mxu0
    %206 = vdwg.mxu0
    %207 = vst [vmem:[#allocation7] sm:$0xff] %v204
    // Predicated region
    $region22: #{softmax_regression_forward.1} parent=1 // pred_check
      _
    $region23: #{softmax_regression_forward.1} parent=1 // pred_check_branch
      %209 = sbr.rel (0) target = $region25
    $region24: #{softmax_regression_forward.1} parent=1 // pred_region
      %211 = vsyncadd [#allocation4], 0
      %s213 = sshll.u32 [#allocation7], 4
      %s214 = int_to_ptr.vmem [resolvable:$true] %s213
      %s215 = sshll.u32 %s3, 4
      %s216 = int_to_ptr.hbm [resolvable:$true] %s215
      %218 = dma.vmem_to_hbm [thread:$0]  %s214, 128, %s216, [#allocation4]
    $region25: #{softmax_regression_forward.1} parent=1 // pred_fallthru
      _
    // Predicated region
    $region26: #{softmax_regression_forward.1} parent=1 // pred_check
      _
    $region27: #{softmax_regression_forward.1} parent=1 // pred_check_branch
      %220 = sbr.rel (0) target = $region29
    $region28: #{softmax_regression_forward.1} parent=1 // pred_region
      %222 = dma.done [#allocation4], 128
    $region29: #{softmax_regression_forward.1} parent=1 // pred_fallthru
      _
    %223 = vsyncpa [#allocation3], 1
    %224 = vsyncpa [#allocation6], 1
    %225 = vsyncpa [#allocation4], 1

</llo_original>
